<compile_context>
chip_gen: v6e
topology: v6e:2x2x1
jax: 0.10.0
libtpu: 0.0.40
codegen_flags: <defaults>
</compile_context>

<pallas_src>
import functools

import jax
import jax.numpy as jnp
from jax import lax
from jax.experimental import pallas as pl
from jax.experimental.pallas import tpu as pltpu

EPS = 1e-5
_TILE_NL_MAX = 512          # lane-axis tile; 2 inputs x 2 buffers << 32 MiB (v7x-safe)
_TILE_CO_MAX = 128          # sublane tile on the C_out axis
_VMEM_LIMIT = 48 * 1024 * 1024


def _round_up(x, m):
    return (x + m - 1) // m * m


def _conv_stats_kernel(w_ref, x_ref, y_ref, sum_ref, sq_ref, sum_sc, sq_sc):
    """Conv matmul + per-channel sum / sumsq accumulated over the NL grid axis."""
    nl = pl.program_id(1)

    @pl.when(nl == 0)
    def _():
        sum_sc[...] = jnp.zeros_like(sum_sc)
        sq_sc[...] = jnp.zeros_like(sq_sc)

    # [TCO, CK_pad] @ [CK_pad, TNL] -> [TCO, TNL]; bf16 operands, f32 accumulate.
    y = jnp.dot(w_ref[...], x_ref[...], preferred_element_type=jnp.float32)
    y_ref[...] = y

    # Padded NL columns / padded C_out rows are exactly zero (zero-padded
    # operands, bias-free conv), so they contribute nothing to the sums; the
    # true element count is applied in pass 2.
    sum_sc[...] += jnp.sum(y, axis=1, keepdims=True)
    sq_sc[...] += jnp.sum(y * y, axis=1, keepdims=True)

    @pl.when(nl == pl.num_programs(1) - 1)
    def _():
        sum_ref[...] = sum_sc[...]
        sq_ref[...] = sq_sc[...]


def _bn_relu_kernel(y_ref, sum_ref, sq_ref, g_ref, b_ref, o_ref, *, count):
    """BatchNorm (training batch stats) folded to scale/shift, then ReLU."""
    inv_cnt = jnp.float32(1.0 / count)
    mean = sum_ref[...] * inv_cnt                                # [TCO, 1]
    var = jnp.maximum(sq_ref[...] * inv_cnt - mean * mean, 0.0)  # clamp fp round-off
    inv = lax.rsqrt(var + EPS)
    scale = g_ref[...] * inv                                     # [TCO, 1]
    shift = b_ref[...] - mean * scale
    o_ref[...] = jnp.maximum(y_ref[...] * scale + shift, 0.0).astype(o_ref.dtype)


def cnn1d_block(x, weight, gamma, beta, *, stride=2, padding=1,
                mxu_dtype=jnp.bfloat16):
    """x: [N, C_in, L] f32; weight: [C_out, C_in, K]; gamma/beta: [C_out]."""
    N, C_in, L = x.shape
    C_out, _, K = weight.shape
    L_out = (L + 2 * padding - K) // stride + 1
    CK = C_in * K
    NL = N * L_out

    # ---- tile / padding geometry --------------------------------------
    tile_nl = min(_TILE_NL_MAX, _round_up(NL, 128))
    nl_pad = _round_up(NL, tile_nl)
    co8 = _round_up(C_out, 8)
    tile_co = min(_TILE_CO_MAX, co8)
    co_pad = _round_up(co8, tile_co)
    ck_pad = _round_up(CK, 8)          # sublane-align only; no wasteful 128x pad
    grid = (co_pad // tile_co, nl_pad // tile_nl)

    # ---- im2col glue (plain JAX) --------------------------------------
    # Note: the K-fold im2col duplication could be removed by doing K shifted
    # matmuls on a single x tile inside the kernel (pl.ds strided slices);
    # with K=3, stride=2 the blow-up is only ~1.5x so im2col is kept here.
    x_pad = jnp.pad(x, ((0, 0), (0, 0), (padding, padding)))
    cols = [x_pad[:, :, k: k + stride * (L_out - 1) + 1: stride] for k in range(K)]
    # x_cols[c*K + k, n*L_out + l] = x_pad[n, c, l*stride + k]
    x_cols = jnp.stack(cols, axis=2).reshape(N, CK, L_out)
    x_cols = jnp.transpose(x_cols, (1, 0, 2)).reshape(CK, NL)
    x_cols = jnp.pad(x_cols, ((0, ck_pad - CK), (0, nl_pad - NL))).astype(mxu_dtype)

    w_flat = weight.reshape(C_out, CK)
    w_flat = jnp.pad(w_flat, ((0, co_pad - C_out), (0, ck_pad - CK))).astype(mxu_dtype)

    g_col = jnp.pad(gamma.astype(jnp.float32), (0, co_pad - C_out),
                    constant_values=1.0).reshape(co_pad, 1)
    b_col = jnp.pad(beta.astype(jnp.float32),
                    (0, co_pad - C_out)).reshape(co_pad, 1)

    # ---- pass 1: conv matmul + BN stats --------------------------------
    y, s1, s2 = pl.pallas_call(
        _conv_stats_kernel,
        out_shape=(
            jax.ShapeDtypeStruct((co_pad, nl_pad), jnp.float32),
            jax.ShapeDtypeStruct((co_pad, 1), jnp.float32),
            jax.ShapeDtypeStruct((co_pad, 1), jnp.float32),
        ),
        grid=grid,
        in_specs=[
            pl.BlockSpec((tile_co, ck_pad), lambda co, nl: (co, 0)),
            pl.BlockSpec((ck_pad, tile_nl), lambda co, nl: (0, nl)),
        ],
        out_specs=(
            pl.BlockSpec((tile_co, tile_nl), lambda co, nl: (co, nl)),
            pl.BlockSpec((tile_co, 1), lambda co, nl: (co, 0)),
            pl.BlockSpec((tile_co, 1), lambda co, nl: (co, 0)),
        ),
        scratch_shapes=[pltpu.VMEM((tile_co, 1), jnp.float32),
                        pltpu.VMEM((tile_co, 1), jnp.float32)],
        compiler_params=pltpu.CompilerParams(
            dimension_semantics=("parallel", "arbitrary"),
            vmem_limit_bytes=_VMEM_LIMIT),
    )(w_flat, x_cols)

    # ---- pass 2: folded BN affine + ReLU --------------------------------
    out_p = pl.pallas_call(
        functools.partial(_bn_relu_kernel, count=float(NL)),
        out_shape=jax.ShapeDtypeStruct((co_pad, nl_pad), jnp.float32),
        grid=grid,
        in_specs=[
            pl.BlockSpec((tile_co, tile_nl), lambda co, nl: (co, nl)),
            pl.BlockSpec((tile_co, 1), lambda co, nl: (co, 0)),
            pl.BlockSpec((tile_co, 1), lambda co, nl: (co, 0)),
            pl.BlockSpec((tile_co, 1), lambda co, nl: (co, 0)),
            pl.BlockSpec((tile_co, 1), lambda co, nl: (co, 0)),
        ],
        out_specs=pl.BlockSpec((tile_co, tile_nl), lambda co, nl: (co, nl)),
        compiler_params=pltpu.CompilerParams(
            dimension_semantics=("parallel", "parallel"),
            vmem_limit_bytes=_VMEM_LIMIT),
    )(y, s1, s2, g_col, b_col)

    # Back to the PyTorch layout [N, C_out, L_out]. The kernel keeps a
    # lane-dense [C_out, N*L_out] slab; this final unpack is a single cheap
    # XLA slice+transpose of only the valid region.
    out = out_p[:C_out, :NL].reshape(C_out, N, L_out)
    return jnp.transpose(out, (1, 0, 2))


def _reference(x, weight, gamma, beta, *, stride=2, padding=1):
    """Pure-JAX reference mirroring the PyTorch module in training mode."""
    y = lax.conv_general_dilated(
        x, weight,
        window_strides=(stride,),
        padding=[(padding, padding)],
        dimension_numbers=("NCH", "OIH", "NCH"),
    )
    mean = y.mean(axis=(0, 2), keepdims=True)
    var = y.var(axis=(0, 2), keepdims=True)   # biased, as BN uses for normalization
    y = (y - mean) / jnp.sqrt(var + EPS)
    y = y * gamma.reshape(1, -1, 1) + beta.reshape(1, -1, 1)
    return jnp.maximum(y, 0.0)


if __name__ == "__main__":
    # Small shapes consistent with the module: seq_in is [N, D, L].
    N, C_in, C_out, L = 2, 4, 8, 16
    K, stride, padding = 3, 2, 1

    key = jax.random.PRNGKey(0)
    kx, kw, kg, kb = jax.random.split(key, 4)

    x = jax.random.normal(kx, (N, C_in, L), dtype=jnp.float32)
    weight = 0.1 * jax.random.normal(kw, (C_out, C_in, K), dtype=jnp.float32)
    gamma = 1.0 + 0.1 * jax.random.normal(kg, (C_out,), dtype=jnp.float32)
    beta = 0.1 * jax.random.normal(kb, (C_out,), dtype=jnp.float32)

    out = cnn1d_block(x, weight, gamma, beta, stride=stride, padding=padding)
    out = jax.block_until_ready(out)

    # The kernel feeds bf16 operands to the MXU (f32 accumulate), so validate
    # against the reference evaluated on the same bf16-rounded inputs.
    x_r = x.astype(jnp.bfloat16).astype(jnp.float32)
    w_r = weight.astype(jnp.bfloat16).astype(jnp.float32)
    ref = _reference(x_r, w_r, gamma, beta, stride=stride, padding=padding)

    L_out = (L + 2 * padding - K) // stride + 1
    assert out.shape == (N, C_out, L_out)
    err = jnp.max(jnp.abs(out - ref))
    assert jnp.allclose(out, ref, atol=2e-3, rtol=2e-3), f"max abs err {err}"

    print("KERNEL_OK")
</pallas_src>

<mosaic_0001>
module attributes {stable_mosaic.version = 11 : i64} {
  func.func @_conv_stats_kernel(%arg0: i32, %arg1: i32, %arg2: memref<8x16xbf16, #tpu.memory_space<vmem>>, %arg3: memref<16x128xbf16, #tpu.memory_space<vmem>>, %arg4: memref<8x128xf32, #tpu.memory_space<vmem>>, %arg5: memref<8x1xf32, #tpu.memory_space<vmem>>, %arg6: memref<8x1xf32, #tpu.memory_space<vmem>>, %arg7: memref<8x1xf32, #tpu.memory_space<vmem>>, %arg8: memref<8x1xf32, #tpu.memory_space<vmem>>) attributes {dimension_semantics = [#tpu.dimension_semantics<parallel>, #tpu.dimension_semantics<arbitrary>], iteration_bounds = array<i64: 1, 1>, scalar_prefetch = 0 : i64, scratch_operands = 2 : i64, tpu.core_type = #tpu.core_type<tc>, window_params = [{transform_indices = @transform_0, window_bounds = array<i64: 8, 16>}, {transform_indices = @transform_1, window_bounds = array<i64: 16, 128>}, {transform_indices = @transform_2, window_bounds = array<i64: 8, 128>}, {transform_indices = @transform_3, window_bounds = array<i64: 8, 1>}, {transform_indices = @transform_4, window_bounds = array<i64: 8, 1>}]} {
    %c0_i32 = arith.constant 0 : i32
    %0 = arith.cmpi eq, %arg1, %c0_i32 : i32
    %1 = arith.extui %0 : i1 to i32
    %c0_i32_0 = arith.constant 0 : i32
    %2 = arith.cmpi ne, %1, %c0_i32_0 : i32
    scf.if %2 {
      %cst_18 = arith.constant 0.000000e+00 : f32
      %21 = vector.broadcast %cst_18 : f32 to vector<8x1xf32>
      %c0_19 = arith.constant 0 : index
      %c0_20 = arith.constant 0 : index
      %22 = vector.load %arg7[%c0_19, %c0_20] : memref<8x1xf32, #tpu.memory_space<vmem>>, vector<8x1xf32>
      tpu.vector_store %arg7[%c0_19, %c0_20], %21 {strides = array<i32>} : memref<8x1xf32, #tpu.memory_space<vmem>>, vector<8x1xf32>,
      %cst_21 = arith.constant 0.000000e+00 : f32
      %23 = vector.broadcast %cst_21 : f32 to vector<8x1xf32>
      %c0_22 = arith.constant 0 : index
      %c0_23 = arith.constant 0 : index
      %24 = vector.load %arg8[%c0_22, %c0_23] : memref<8x1xf32, #tpu.memory_space<vmem>>, vector<8x1xf32>
      tpu.vector_store %arg8[%c0_22, %c0_23], %23 {strides = array<i32>} : memref<8x1xf32, #tpu.memory_space<vmem>>, vector<8x1xf32>,
    } else {
    }
    %c0 = arith.constant 0 : index
    %c0_1 = arith.constant 0 : index
    %3 = vector.load %arg2[%c0, %c0_1] : memref<8x16xbf16, #tpu.memory_space<vmem>>, vector<8x16xbf16>
    %c0_2 = arith.constant 0 : index
    %c0_3 = arith.constant 0 : index
    %4 = vector.load %arg3[%c0_2, %c0_3] : memref<16x128xbf16, #tpu.memory_space<vmem>>, vector<16x128xbf16>
    %cst = arith.constant dense<0.000000e+00> : vector<8x128xf32>
    %5 = tpu.matmul %3, %4, %cst {dimension_numbers = #tpu.dot_dimension_numbers<[1], [0], [0], [1], [0, 0, 1, 1], [], []>} : vector<8x16xbf16>, vector<16x128xbf16>, vector<8x128xf32> -> vector<8x128xf32>
    %c0_4 = arith.constant 0 : index
    %c0_5 = arith.constant 0 : index
    %6 = vector.load %arg4[%c0_4, %c0_5] : memref<8x128xf32, #tpu.memory_space<vmem>>, vector<8x128xf32>
    tpu.vector_store %arg4[%c0_4, %c0_5], %5 {strides = array<i32>} : memref<8x128xf32, #tpu.memory_space<vmem>>, vector<8x128xf32>,
    %c0_6 = arith.constant 0 : index
    %c0_7 = arith.constant 0 : index
    %7 = vector.load %arg7[%c0_6, %c0_7] : memref<8x1xf32, #tpu.memory_space<vmem>>, vector<8x1xf32>
    %cst_8 = arith.constant dense<0.000000e+00> : vector<8xf32>
    %8 = vector.multi_reduction <add>, %5, %cst_8 [1] : vector<8x128xf32> to vector<8xf32>
    %9 = vector.shape_cast %8 : vector<8xf32> to vector<8x1xf32>
    %10 = arith.addf %7, %9 : vector<8x1xf32>
    %c0_9 = arith.constant 0 : index
    %c0_10 = arith.constant 0 : index
    %11 = vector.load %arg7[%c0_9, %c0_10] : memref<8x1xf32, #tpu.memory_space<vmem>>, vector<8x1xf32>
    tpu.vector_store %arg7[%c0_9, %c0_10], %10 {strides = array<i32>} : memref<8x1xf32, #tpu.memory_space<vmem>>, vector<8x1xf32>,
    %c0_11 = arith.constant 0 : index
    %c0_12 = arith.constant 0 : index
    %12 = vector.load %arg8[%c0_11, %c0_12] : memref<8x1xf32, #tpu.memory_space<vmem>>, vector<8x1xf32>
    %13 = arith.mulf %5, %5 : vector<8x128xf32>
    %cst_13 = arith.constant dense<0.000000e+00> : vector<8xf32>
    %14 = vector.multi_reduction <add>, %13, %cst_13 [1] : vector<8x128xf32> to vector<8xf32>
    %15 = vector.shape_cast %14 : vector<8xf32> to vector<8x1xf32>
    %16 = arith.addf %12, %15 : vector<8x1xf32>
    %c0_14 = arith.constant 0 : index
    %c0_15 = arith.constant 0 : index
    %17 = vector.load %arg8[%c0_14, %c0_15] : memref<8x1xf32, #tpu.memory_space<vmem>>, vector<8x1xf32>
    tpu.vector_store %arg8[%c0_14, %c0_15], %16 {strides = array<i32>} : memref<8x1xf32, #tpu.memory_space<vmem>>, vector<8x1xf32>,
    %c0_i32_16 = arith.constant 0 : i32
    %18 = arith.cmpi eq, %arg1, %c0_i32_16 : i32
    %19 = arith.extui %18 : i1 to i32
    %c0_i32_17 = arith.constant 0 : i32
    %20 = arith.cmpi ne, %19, %c0_i32_17 : i32
    scf.if %20 {
      %c0_18 = arith.constant 0 : index
      %c0_19 = arith.constant 0 : index
      %21 = vector.load %arg7[%c0_18, %c0_19] : memref<8x1xf32, #tpu.memory_space<vmem>>, vector<8x1xf32>
      %c0_20 = arith.constant 0 : index
      %c0_21 = arith.constant 0 : index
      %22 = vector.load %arg5[%c0_20, %c0_21] : memref<8x1xf32, #tpu.memory_space<vmem>>, vector<8x1xf32>
      tpu.vector_store %arg5[%c0_20, %c0_21], %21 {strides = array<i32>} : memref<8x1xf32, #tpu.memory_space<vmem>>, vector<8x1xf32>,
      %c0_22 = arith.constant 0 : index
      %c0_23 = arith.constant 0 : index
      %23 = vector.load %arg8[%c0_22, %c0_23] : memref<8x1xf32, #tpu.memory_space<vmem>>, vector<8x1xf32>
      %c0_24 = arith.constant 0 : index
      %c0_25 = arith.constant 0 : index
      %24 = vector.load %arg6[%c0_24, %c0_25] : memref<8x1xf32, #tpu.memory_space<vmem>>, vector<8x1xf32>
      tpu.vector_store %arg6[%c0_24, %c0_25], %23 {strides = array<i32>} : memref<8x1xf32, #tpu.memory_space<vmem>>, vector<8x1xf32>,
    } else {
    }
    return
  }
  func.func @transform_0(%arg0: i32, %arg1: i32) -> (i32, i32) {
    %c0_i32 = arith.constant 0 : i32
    %c0_i32_0 = arith.constant 0 : i32
    return %arg0, %c0_i32 : i32, i32
  }
  func.func @transform_1(%arg0: i32, %arg1: i32) -> (i32, i32) {
    %c0_i32 = arith.constant 0 : i32
    %c0_i32_0 = arith.constant 0 : i32
    return %c0_i32, %arg1 : i32, i32
  }
  func.func @transform_2(%arg0: i32, %arg1: i32) -> (i32, i32) {
    %c0_i32 = arith.constant 0 : i32
    return %arg0, %arg1 : i32, i32
  }
  func.func @transform_3(%arg0: i32, %arg1: i32) -> (i32, i32) {
    %c0_i32 = arith.constant 0 : i32
    %c0_i32_0 = arith.constant 0 : i32
    return %arg0, %c0_i32 : i32, i32
  }
  func.func @transform_4(%arg0: i32, %arg1: i32) -> (i32, i32) {
    %c0_i32 = arith.constant 0 : i32
    %c0_i32_0 = arith.constant 0 : i32
    return %arg0, %c0_i32 : i32, i32
  }
}

</mosaic_0001>

<llo_original>
// kernel: tpu_custom_call.1
$region0: #{tpu_custom_call.1}
  #allocation0 [shape = 'u32[]', space=smem, size = 0x4, offset = 0x4, fixed_abs, tag = 'smem constant byte address 0x4 - core index']
  #allocation1 [shape = 'u32[144,128]{1,0:T(1,128)}', space=vmem, size = 0x12000, scoped, tag = 'internal scratch']
  #allocation2 [shape = 'f32[8,1]{1,0:T(8,128)}', space=vmem, size = 0x1000, scoped, tag = 'scratch operand']
  #allocation3 [shape = 'f32[8,1]{1,0:T(8,128)}', space=vmem, size = 0x1000, scoped, tag = 'scratch operand']
  %s0 = inlined_call_operand.hbm [shape: bf16[8,16], index: 0, kind: input, shape index: {}]
  %s1 = inlined_call_operand.hbm [shape: bf16[16,128], index: 1, kind: input, shape index: {}]
  %s2 = inlined_call_operand.hbm [shape: f32[8,128], index: 2, kind: output, shape index: {0}]
  %s3 = inlined_call_operand.vmem [shape: f32[8,1], index: 3, kind: output, shape index: {1}]
  %s4 = inlined_call_operand.vmem [shape: f32[8,1], index: 4, kind: output, shape index: {2}]
  %5 = xla_tuple %s2, %s3, %s4
  %s6 = sld [smem:[#allocation0]]
  $region50: #{tpu_custom_call.1} parent=0
    _
  %s8 = ssub.s32 1, %s6
  %s9 = scalar_select 0, %s8, %s6
  $region1: #{tpu_custom_call.1} parent=0
    #allocation4 [shape = 'u8[2048]{0}', space=vmem, size = 0x800, scoped, tag = 'input window, operand 0, single buffered']
    #allocation5 [shape = 's32[1]{0}', space=sflag, size = 0x4, scoped, tag = 'scoped memory for tpu_custom_call.1']
    #allocation6 [shape = 's32[1]{0}', space=sflag, size = 0x4, scoped, tag = 'scoped memory for tpu_custom_call.1']
    #allocation7 [shape = 'u8[4096]{0}', space=vmem, size = 0x1000, scoped, tag = 'input window, operand 1, single buffered']
    #allocation8 [shape = 's32[1]{0}', space=sflag, size = 0x4, scoped, tag = 'scoped memory for tpu_custom_call.1']
    #allocation9 [shape = 'u8[4096]{0}', space=vmem, size = 0x1000, scoped, tag = 'output window, operand 0, single buffered']
    %10 = vsyncpa [#allocation5], 0
    %11 = vsyncpa [#allocation8], 0
    %12 = vsyncpa [#allocation6], 0
    // Predicated region
    $region2: #{tpu_custom_call.1} parent=1 // pred_check
      _
    $region3: #{tpu_custom_call.1} parent=1 // pred_check_branch
      %14 = sbr.rel (0) target = $region5
    $region4: #{tpu_custom_call.1} parent=1 // pred_region
      %s16 = ssub.s32 64, 64
      %17 = vsyncadd [#allocation5], %s16
      %s19 = sshll.u32 [#allocation4], 4
      %s20 = int_to_ptr.vmem [resolvable:$true] %s19
      %22 = dma.hbm_to_vmem [thread:$0]  %s0, 64, %s20, [#allocation5]
    $region5: #{tpu_custom_call.1} parent=1 // pred_fallthru
      _
    // Predicated region
    $region6: #{tpu_custom_call.1} parent=1 // pred_check
      _
    $region7: #{tpu_custom_call.1} parent=1 // pred_check_branch
      %24 = sbr.rel (0) target = $region9
    $region8: #{tpu_custom_call.1} parent=1 // pred_region
      %s26 = ssub.s32 128, 128
      %27 = vsyncadd [#allocation8], %s26
      %s28 = sshll.u32 [#allocation7], 4
      %s29 = int_to_ptr.vmem [resolvable:$true] %s28
      %34 = dma.hbm_to_vmem [thread:$0]  %s1, 128, %s29, [#allocation8], 64, 64, 4
    $region9: #{tpu_custom_call.1} parent=1 // pred_fallthru
      _
    // Predicated region
    $region10: #{tpu_custom_call.1} parent=1 // pred_check
      _
    $region11: #{tpu_custom_call.1} parent=1 // pred_check_branch
      %36 = sbr.rel (0) target = $region13
    $region12: #{tpu_custom_call.1} parent=1 // pred_region
      %37 = dma.done [#allocation5], 64
    $region13: #{tpu_custom_call.1} parent=1 // pred_fallthru
      _
    // Predicated region
    $region14: #{tpu_custom_call.1} parent=1 // pred_check
      _
    $region15: #{tpu_custom_call.1} parent=1 // pred_check_branch
      %39 = sbr.rel (0) target = $region17
    $region16: #{tpu_custom_call.1} parent=1 // pred_region
      %40 = dma.done [#allocation8], 128
    $region17: #{tpu_custom_call.1} parent=1 // pred_fallthru
      _
    %p42 = scmp.eq.s32.totalorder 0, 0
    // Predicated region
    $region18: #{tpu_custom_call.1} parent=1 // pred_check
      %p43 = pneg %p42
    $region19: #{tpu_custom_call.1} parent=1 // pred_check_branch
      %45 = sbr.rel (%p43) target = $region21
    $region20: #{tpu_custom_call.1} parent=1 // pred_region
      %vm46 = vcmask 7168
      %47 = vst.msk [vmem:[#allocation2] sm:$0xff] %vm46, 0.0
      %48 = vst.msk [vmem:[#allocation3] sm:$0xff] %vm46, 0.0
    $region21: #{tpu_custom_call.1} parent=1 // pred_fallthru
      _
    %v49 = vld [vmem:[#allocation4] sm:$0xf]
    %v50 = vld [vmem:[#allocation7] sm:$0xf]
    %v51 = vld [vmem:[#allocation7 + $0x4] sm:$0xf]
    %v54 = vunpack.c.l.b16 %v50
    %v55 = vunpack.c.l.b16 %v51
    %v56 = vpack.c.b16 %v55, %v54
    %vm58 = vcmask 130048
    %v60 = vsel %vm58, %v49, 0
    %62 = vmatprep.subr.bf16.mxu0 0
    %63 = vmatpush1.bf16.msra.mxu0 0
    %64 = vmatprep.subr.bf16.mxu0 0
    %65 = vmatpush1.bf16.msra.mxu0 0
    %66 = vmatprep.subr.bf16.mxu0 0
    %67 = vmatpush1.bf16.msra.mxu0 0
    %68 = vmatprep.subr.bf16.mxu0 0
    %69 = vmatpush1.bf16.msra.mxu0 0
    %70 = vmatprep.subr.bf16.mxu0 0
    %71 = vmatpush1.bf16.msra.mxu0 0
    %72 = vmatprep.subr.bf16.mxu0 0
    %73 = vmatpush1.bf16.msra.mxu0 0
    %74 = vmatprep.subr.bf16.mxu0 0
    %75 = vmatpush1.bf16.msra.mxu0 0
    %76 = vmatprep.subr.bf16.mxu0 0
    %77 = vmatpush1.bf16.msra.mxu0 %v56
    %78 = vmatprep.subr.bf16.mxu0 0
    %79 = vmatpush2.bf16.msra.mxu0 0
    %80 = vmatprep.subr.bf16.mxu0 0
    %81 = vmatpush2.bf16.msra.mxu0 0
    %82 = vmatprep.subr.bf16.mxu0 0
    %83 = vmatpush2.bf16.msra.mxu0 0
    %84 = vmatprep.subr.bf16.mxu0 0
    %85 = vmatpush2.bf16.msra.mxu0 0
    %86 = vmatprep.subr.bf16.mxu0 0
    %87 = vmatpush2.bf16.msra.mxu0 0
    %88 = vmatprep.subr.bf16.mxu0 0
    %89 = vmatpush2.bf16.msra.mxu0 0
    %90 = vmatprep.subr.bf16.mxu0 0
    %91 = vmatpush2.bf16.msra.mxu0 0
    %92 = vmatprep.subr.bf16.mxu0 0
    %93 = vmatpush2.bf16.msra.mxu0 0
    %94 = vmatprep.mubr.bf16.mxu0 0
    %95 = vmatmul.mubr.bf16.gmra.mxu0 %v60
    %v96 = vpop.f32.mrf.mxu0
    %v97 = vadd.f32 0.0, %v96
    %v98 = vpop.f32.mrf.mxu0
    %v99 = vpop.f32.mrf.mxu0
    %v100 = vpop.f32.mrf.mxu0
    %101 = vdwg.mxu0
    %102 = vst [vmem:[#allocation9] sm:$0xff] %v97
    %v103 = vld [vmem:[#allocation2] sm:$0xff]
    %104 = vadd.xlane.f32.xlu0 %v97
    %v105 = vpop.xlane.xlu0 %104
    %v106 = vadd.f32 %v103, %v105
    %vm107 = vcmask 7168
    %108 = vst.msk [vmem:[#allocation2] sm:$0xff] %vm107, %v106
    %v109 = vld [vmem:[#allocation3] sm:$0xff]
    %v110 = vmul.f32 %v97, %v97
    %111 = vadd.xlane.f32.xlu0 %v110
    %v112 = vpop.xlane.xlu0 %111
    %v113 = vadd.f32 %v109, %v112
    %114 = vst.msk [vmem:[#allocation3] sm:$0xff] %vm107, %v113
    // Predicated region
    $region22: #{tpu_custom_call.1} parent=1 // pred_check
      %p115 = pneg %p42
    $region23: #{tpu_custom_call.1} parent=1 // pred_check_branch
      %117 = sbr.rel (%p115) target = $region25
    $region24: #{tpu_custom_call.1} parent=1 // pred_region
      %v118 = vld [vmem:[#allocation2] sm:$0xff]
      %119 = vst.msk [vmem:[%s3] sm:$0xff] %vm107, %v118
      %v120 = vld [vmem:[#allocation3] sm:$0xff]
      %121 = vst.msk [vmem:[%s4] sm:$0xff] %vm107, %v120
    $region25: #{tpu_custom_call.1} parent=1 // pred_fallthru
      _
    // Predicated region
    $region26: #{tpu_custom_call.1} parent=1 // pred_check
      _
    $region27: #{tpu_custom_call.1} parent=1 // pred_check_branch
      %123 = sbr.rel (0) target = $region29
    $region28: #{tpu_custom_call.1} parent=1 // pred_region
      %s125 = ssub.s32 128, 128
      %126 = vsyncadd [#allocation6], %s125
      %s128 = sshll.u32 [#allocation9], 4
      %s129 = int_to_ptr.vmem [resolvable:$true] %s128
      %131 = dma.vmem_to_hbm [thread:$0]  %s129, 128, %s2, [#allocation6]
    $region29: #{tpu_custom_call.1} parent=1 // pred_fallthru
      _
    // Predicated region
    $region30: #{tpu_custom_call.1} parent=1 // pred_check
      _
    $region31: #{tpu_custom_call.1} parent=1 // pred_check_branch
      %133 = sbr.rel (0) target = $region33
    $region32: #{tpu_custom_call.1} parent=1 // pred_region
      _
    $region33: #{tpu_custom_call.1} parent=1 // pred_fallthru
      _
    // Predicated region
    $region34: #{tpu_custom_call.1} parent=1 // pred_check
      _
    $region35: #{tpu_custom_call.1} parent=1 // pred_check_branch
      %135 = sbr.rel (0) target = $region37
    $region36: #{tpu_custom_call.1} parent=1 // pred_region
      _
    $region37: #{tpu_custom_call.1} parent=1 // pred_fallthru
      _
    // Predicated region
    $region38: #{tpu_custom_call.1} parent=1 // pred_check
      _
    $region39: #{tpu_custom_call.1} parent=1 // pred_check_branch
      %137 = sbr.rel (0) target = $region41
    $region40: #{tpu_custom_call.1} parent=1 // pred_region
      %138 = dma.done [#allocation6], 128
    $region41: #{tpu_custom_call.1} parent=1 // pred_fallthru
      _
    // Predicated region
    $region42: #{tpu_custom_call.1} parent=1 // pred_check
      _
    $region43: #{tpu_custom_call.1} parent=1 // pred_check_branch
      %140 = sbr.rel (0) target = $region45
    $region44: #{tpu_custom_call.1} parent=1 // pred_region
      _
    $region45: #{tpu_custom_call.1} parent=1 // pred_fallthru
      _
    // Predicated region
    $region46: #{tpu_custom_call.1} parent=1 // pred_check
      _
    $region47: #{tpu_custom_call.1} parent=1 // pred_check_branch
      %142 = sbr.rel (0) target = $region49
    $region48: #{tpu_custom_call.1} parent=1 // pred_region
      _
    $region49: #{tpu_custom_call.1} parent=1 // pred_fallthru
      _
    %143 = vsyncpa [#allocation5], 1
    %144 = vsyncpa [#allocation8], 1
    %145 = vsyncpa [#allocation6], 1

</llo_original>
